<compile_context>
chip_gen: v6e
topology: v6e:2x2x1
jax: 0.10.0
libtpu: 0.0.40
codegen_flags: <defaults>
</compile_context>

<pallas_src>
import jax
import jax.numpy as jnp
from jax import lax
from jax.experimental import pallas as pl
from jax.experimental.pallas import tpu as pltpu


def _make_cce_mse_kernel(n: int, tn: int, c: int, accumulate: bool):
    """Kernel closure over static sizes (true N, rows-per-tile TN, classes C)."""

    def kernel(logits_ref, targets_ref, out_ref):
        pid = pl.program_id(0)

        x_nat = logits_ref[...]                       # (TN, C) native dtype
        tgt = targets_ref[...]                        # (TN, 1) int32 class ids

        # Row-validity mask for the (possibly partial) last tile.
        row_ids = pid * tn + lax.broadcasted_iota(jnp.int32, (tn, 1), 0)
        valid = row_ids < n                           # (TN, 1) bool

        col_ids = lax.broadcasted_iota(jnp.int32, (1, c), 1)   # (1, C)

        # Row max + argmax equality in the native dtype (exact; bf16 packs
        # 2 elems/lane on the VPU). Cast of the (TN,1) max is exact.
        row_max_nat = jnp.max(x_nat, axis=-1, keepdims=True)    # (TN, 1)
        is_max = x_nat == row_max_nat                            # (TN, C)
        shifted = x_nat.astype(jnp.float32) - row_max_nat.astype(jnp.float32)
        # x_nat is dead from here on.

        # ---- cross entropy: nll = lse(shifted) - shifted[tgt] ----
        lse = jnp.log(jnp.sum(jnp.exp(shifted), axis=-1, keepdims=True))
        onehot = col_ids == tgt                                  # (TN, C)
        tgt_shifted = jnp.sum(jnp.where(onehot, shifted, 0.0),
                              axis=-1, keepdims=True)            # (TN, 1)
        nll = lse - tgt_shifted                                  # (TN, 1)

        # ---- MSE(argmax(x, axis=1), target) ----
        # First index achieving the row max (torch first-occurrence semantics).
        # NOTE: rows that are all-NaN give preds == C (reference argmax picks 0).
        idx_or_big = jnp.where(is_max, col_ids, c)
        preds = jnp.min(idx_or_big, axis=-1, keepdims=True).astype(jnp.float32)
        diff = preds - tgt.astype(jnp.float32)

        # Keep these as selects (not mask-multiplies): padded garbage rows may
        # produce inf/NaN upstream but are never propagated through a select.
        nll_sum = jnp.sum(jnp.where(valid, nll, 0.0))
        sq_sum = jnp.sum(jnp.where(valid, diff * diff, 0.0))

        if accumulate:
            @pl.when(pid == 0)
            def _():
                out_ref[0, 0] = 0.0
                out_ref[0, 1] = 0.0
            out_ref[0, 0] += nll_sum
            out_ref[0, 1] += sq_sum
        else:
            out_ref[0, 0] = nll_sum
            out_ref[0, 1] = sq_sum

    return kernel


def custom_cce_loss(logits, targets, *, max_rows_per_tile: int = 4096):
    """logits: (N, C) float (f32 or bf16); targets: (N,) integer class ids.

    Returns 0.5 * CrossEntropy(logits, targets) + 0.5 * MSE(argmax(logits), targets).
    """
    n, c = logits.shape
    itemsize = jnp.dtype(logits.dtype).itemsize

    # ---- generation-aware budgets ----
    try:
        kind = jax.devices()[0].device_kind.lower()
    except Exception:  # pragma: no cover - conservative fallback
        kind = ""
    is_v7 = ("v7" in kind) or ("7x" in kind)
    big_vmem = (not is_v7) and any(t in kind for t in ("v4", "v5", "v6"))
    multi_tc = is_v7  # v7x has 2 TensorCores per chip

    if big_vmem:
        vmem_limit = 64 * 1024 * 1024      # 128 MiB physical parts
        tile_input_bytes = 4 * 1024 * 1024
        vmem_budget = 48 * 1024 * 1024
    else:
        vmem_limit = 32 * 1024 * 1024      # v7x (64 MiB physical) / unknown
        tile_input_bytes = 2 * 1024 * 1024
        vmem_budget = 20 * 1024 * 1024

    # Row tile aligned to the dtype's sublane pack: 8 (f32), 16 (bf16), 32 (i8).
    row_align = max(8, 32 // max(itemsize, 1))

    # Rows per tile: (a) input-bytes target (HBM-bound -> fat DMAs, few grid
    # steps), (b) working-set ceiling (2 input buffers + ~4 f32 full-tile temps).
    row_ws_bytes = c * (2 * itemsize + 4 * 4) + 16
    tn_bytes = tile_input_bytes // max(c * itemsize, 1)
    tn_ws = vmem_budget // max(row_ws_bytes, 1)
    tn = min(max_rows_per_tile, tn_bytes, tn_ws)
    tn = max(row_align, (tn // row_align) * row_align)

    if row_align * row_ws_bytes > vmem_limit:
        # TODO(synk): tile the class axis (online logsumexp + running argmax)
        # for vocab-scale C instead of failing here.
        raise NotImplementedError(
            f"class dim C={c} too large for a single-row-tile working set")

    if tn >= n:
        if multi_tc and n > row_align:
            # Keep >= 2 grid tiles so both v7x TensorCores get work.
            tn = ((pl.cdiv(n, 2) + row_align - 1) // row_align) * row_align
        else:
            tn = n  # single full-extent block (always a legal block shape)
    num_tiles = pl.cdiv(n, tn)

    targets2d = targets.astype(jnp.int32).reshape(n, 1)

    if multi_tc:
        # Per-tile partials so the grid axis can shard across both TCs.
        out_shape = jax.ShapeDtypeStruct((num_tiles, 2), jnp.float32)
        out_spec = pl.BlockSpec((1, 2), lambda i: (i, 0),
                                memory_space=pltpu.MemorySpace.SMEM)
        dim_sem = ("parallel",)
        accumulate = False
    else:
        # Single TC: accumulate into one (1, 2) SMEM block, no wrapper reduce.
        out_shape = jax.ShapeDtypeStruct((1, 2), jnp.float32)
        out_spec = pl.BlockSpec((1, 2), lambda i: (0, 0),
                                memory_space=pltpu.MemorySpace.SMEM)
        dim_sem = ("arbitrary",)
        accumulate = True

    cost = pl.CostEstimate(
        flops=int(7 * n * c),
        transcendentals=int(n * c),
        bytes_accessed=int(n * c * itemsize + n * 4 + num_tiles * 8),
    )

    partials = pl.pallas_call(
        _make_cce_mse_kernel(n, tn, c, accumulate),
        out_shape=out_shape,
        grid=(num_tiles,),
        in_specs=[
            pl.BlockSpec((tn, c), lambda i: (i, 0)),   # logits tile (VMEM)
            pl.BlockSpec((tn, 1), lambda i: (i, 0)),   # targets tile (VMEM)
        ],
        out_specs=out_spec,
        compiler_params=pltpu.CompilerParams(
            dimension_semantics=dim_sem,
            vmem_limit_bytes=vmem_limit,
        ),
        cost_estimate=cost,
    )(logits, targets2d)

    sums = jnp.sum(partials, axis=0)          # [sum_nll, sum_sq]
    return 0.5 * (sums[0] + sums[1]) * jnp.float32(1.0 / n)


def _reference(logits, targets):
    # Pure-JAX reference mirroring the PyTorch module.
    lsm = jax.nn.log_softmax(logits.astype(jnp.float32), axis=1)
    loss1 = -jnp.mean(jnp.take_along_axis(lsm, targets[:, None], axis=1))
    preds = jnp.argmax(logits, axis=1).astype(jnp.float32)
    loss2 = jnp.mean((preds - targets.astype(jnp.float32)) ** 2)
    return 0.5 * loss1 + 0.5 * loss2


if __name__ == "__main__":
    key = jax.random.PRNGKey(0)
    k1, k2, k3, k4, k5, k6 = jax.random.split(key, 6)

    # Test 1: small f32 case, single (or two, on v7x) tile(s).
    N, C = 8, 16
    logits = jax.random.normal(k1, (N, C), dtype=jnp.float32)
    targets = jax.random.randint(k2, (N,), 0, C, dtype=jnp.int32)
    loss = jax.block_until_ready(custom_cce_loss(logits, targets))
    ref = _reference(logits, targets)
    assert jnp.allclose(loss, ref, rtol=1e-5, atol=1e-5), (loss, ref)

    # Test 2: bf16 input, multiple tiles with a partial remainder tile
    # (exercises native-dtype max/argmax path, SMEM accumulation, row mask).
    N2, C2 = 40, 16
    logits2 = jax.random.normal(k3, (N2, C2), dtype=jnp.bfloat16)
    targets2 = jax.random.randint(k4, (N2,), 0, C2, dtype=jnp.int32)
    loss2 = jax.block_until_ready(
        custom_cce_loss(logits2, targets2, max_rows_per_tile=16))
    ref2 = _reference(logits2, targets2)
    assert jnp.allclose(loss2, ref2, rtol=1e-4, atol=1e-4), (loss2, ref2)

    # Test 3: f32, N not a multiple of 8, default tiling (full-extent or
    # split-in-two block depending on generation).
    N3, C3 = 37, 16
    logits3 = jax.random.normal(k5, (N3, C3), dtype=jnp.float32)
    targets3 = jax.random.randint(k6, (N3,), 0, C3, dtype=jnp.int32)
    loss3 = jax.block_until_ready(custom_cce_loss(logits3, targets3))
    ref3 = _reference(logits3, targets3)
    assert jnp.allclose(loss3, ref3, rtol=1e-5, atol=1e-5), (loss3, ref3)

    print("KERNEL_OK")
</pallas_src>

<mosaic_0001>
module attributes {stable_mosaic.version = 11 : i64} {
  func.func @kernel(%arg0: i32, %arg1: memref<8x16xf32, #tpu.memory_space<vmem>>, %arg2: memref<8x1xi32, #tpu.memory_space<vmem>>, %arg3: memref<1x2xf32, #tpu.memory_space<smem>>) attributes {dimension_semantics = [#tpu.dimension_semantics<arbitrary>], iteration_bounds = array<i64: 1>, scalar_prefetch = 0 : i64, scratch_operands = 0 : i64, tpu.core_type = #tpu.core_type<tc>, window_params = [{transform_indices = @transform_0, window_bounds = array<i64: 8, 16>}, {transform_indices = @transform_1, window_bounds = array<i64: 8, 1>}, {transform_indices = @transform_2, window_bounds = array<i64: 1, 2>}]} {
    %c0 = arith.constant 0 : index
    %c0_0 = arith.constant 0 : index
    %0 = vector.load %arg1[%c0, %c0_0] : memref<8x16xf32, #tpu.memory_space<vmem>>, vector<8x16xf32>
    %c0_1 = arith.constant 0 : index
    %c0_2 = arith.constant 0 : index
    %1 = vector.load %arg2[%c0_1, %c0_2] : memref<8x1xi32, #tpu.memory_space<vmem>>, vector<8x1xi32>
    %c8_i32 = arith.constant 8 : i32
    %2 = arith.muli %arg0, %c8_i32 : i32
    %3 = tpu.iota {dimensions = array<i32: 0>} : vector<8x1xi32>
    %4 = vector.broadcast %2 : i32 to vector<8x1xi32>
    %5 = arith.addi %4, %3 : vector<8x1xi32>
    %c8_i32_3 = arith.constant 8 : i32
    %6 = vector.broadcast %c8_i32_3 : i32 to vector<8x1xi32>
    %7 = arith.cmpi slt, %5, %6 : vector<8x1xi32>
    %8 = tpu.iota {dimensions = array<i32: 1>} : vector<1x16xi32>
    %cst = arith.constant dense<0xFF800000> : vector<8xf32>
    %9 = vector.multi_reduction <maximumf>, %0, %cst [1] : vector<8x16xf32> to vector<8xf32>
    %10 = vector.shape_cast %9 : vector<8xf32> to vector<8x1xf32>
    %11 = vector.broadcast %10 : vector<8x1xf32> to vector<8x16xf32>
    %12 = arith.cmpf oeq, %0, %11 : vector<8x16xf32>
    %13 = vector.broadcast %10 : vector<8x1xf32> to vector<8x16xf32>
    %14 = arith.subf %0, %13 : vector<8x16xf32>
    %15 = math.exp %14 : vector<8x16xf32>
    %cst_4 = arith.constant dense<0.000000e+00> : vector<8xf32>
    %16 = vector.multi_reduction <add>, %15, %cst_4 [1] : vector<8x16xf32> to vector<8xf32>
    %17 = vector.shape_cast %16 : vector<8xf32> to vector<8x1xf32>
    %18 = math.log %17 : vector<8x1xf32>
    %19 = vector.broadcast %8 : vector<1x16xi32> to vector<8x16xi32>
    %20 = vector.broadcast %1 : vector<8x1xi32> to vector<8x16xi32>
    %21 = arith.cmpi eq, %19, %20 : vector<8x16xi32>
    %cst_5 = arith.constant 0.000000e+00 : f32
    %22 = vector.broadcast %cst_5 : f32 to vector<8x16xf32>
    %23 = arith.select %21, %14, %22 : vector<8x16xi1>, vector<8x16xf32>
    %cst_6 = arith.constant dense<0.000000e+00> : vector<8xf32>
    %24 = vector.multi_reduction <add>, %23, %cst_6 [1] : vector<8x16xf32> to vector<8xf32>
    %25 = vector.shape_cast %24 : vector<8xf32> to vector<8x1xf32>
    %26 = arith.subf %18, %25 : vector<8x1xf32>
    %c16_i32 = arith.constant 16 : i32
    %27 = vector.shape_cast %8 : vector<1x16xi32> to vector<1x16xi32>
    %28 = vector.broadcast %27 : vector<1x16xi32> to vector<8x16xi32>
    %29 = vector.broadcast %c16_i32 : i32 to vector<8x16xi32>
    %30 = arith.select %12, %28, %29 : vector<8x16xi1>, vector<8x16xi32>
    %cst_7 = arith.constant dense<2147483647> : vector<8xi32>
    %31 = vector.multi_reduction <minsi>, %30, %cst_7 [1] : vector<8x16xi32> to vector<8xi32>
    %32 = vector.shape_cast %31 : vector<8xi32> to vector<8x1xi32>
    %33 = arith.sitofp %32 : vector<8x1xi32> to vector<8x1xf32>
    %34 = arith.sitofp %1 : vector<8x1xi32> to vector<8x1xf32>
    %35 = arith.subf %33, %34 : vector<8x1xf32>
    %cst_8 = arith.constant 0.000000e+00 : f32
    %36 = vector.broadcast %cst_8 : f32 to vector<8x1xf32>
    %37 = arith.select %7, %26, %36 : vector<8x1xi1>, vector<8x1xf32>
    %38 = vector.shape_cast %37 : vector<8x1xf32> to vector<1x8x1xf32>
    %cst_9 = arith.constant dense<0.000000e+00> : vector<1xf32>
    %39 = vector.multi_reduction <add>, %38, %cst_9 [1, 2] : vector<1x8x1xf32> to vector<1xf32>
    %40 = vector.shape_cast %39 : vector<1xf32> to vector<1x1x1xf32>
    %41 = vector.extract %40[0, 0, 0] : f32 from vector<1x1x1xf32>
    %42 = arith.mulf %35, %35 : vector<8x1xf32>
    %cst_10 = arith.constant 0.000000e+00 : f32
    %43 = vector.broadcast %cst_10 : f32 to vector<8x1xf32>
    %44 = arith.select %7, %42, %43 : vector<8x1xi1>, vector<8x1xf32>
    %45 = vector.shape_cast %44 : vector<8x1xf32> to vector<1x8x1xf32>
    %cst_11 = arith.constant dense<0.000000e+00> : vector<1xf32>
    %46 = vector.multi_reduction <add>, %45, %cst_11 [1, 2] : vector<1x8x1xf32> to vector<1xf32>
    %47 = vector.shape_cast %46 : vector<1xf32> to vector<1x1x1xf32>
    %48 = vector.extract %47[0, 0, 0] : f32 from vector<1x1x1xf32>
    %c0_i32 = arith.constant 0 : i32
    %49 = arith.cmpi eq, %arg0, %c0_i32 : i32
    %50 = arith.extui %49 : i1 to i32
    %c0_i32_12 = arith.constant 0 : i32
    %51 = arith.cmpi ne, %50, %c0_i32_12 : i32
    scf.if %51 {
      %cst_20 = arith.constant 0.000000e+00 : f32
      %c0_21 = arith.constant 0 : index
      %c0_22 = arith.constant 0 : index
      %58 = memref.load %arg3[%c0_21, %c0_22] : memref<1x2xf32, #tpu.memory_space<smem>>
      memref.store %cst_20, %arg3[%c0_21, %c0_22] : memref<1x2xf32, #tpu.memory_space<smem>>
      %cst_23 = arith.constant 0.000000e+00 : f32
      %c0_24 = arith.constant 0 : index
      %c1_25 = arith.constant 1 : index
      %59 = memref.load %arg3[%c0_24, %c1_25] : memref<1x2xf32, #tpu.memory_space<smem>>
      memref.store %cst_23, %arg3[%c0_24, %c1_25] : memref<1x2xf32, #tpu.memory_space<smem>>
    } else {
    }
    %c0_13 = arith.constant 0 : index
    %c0_14 = arith.constant 0 : index
    %52 = memref.load %arg3[%c0_13, %c0_14] : memref<1x2xf32, #tpu.memory_space<smem>>
    %53 = arith.addf %52, %41 : f32
    %c0_15 = arith.constant 0 : index
    %c0_16 = arith.constant 0 : index
    %54 = memref.load %arg3[%c0_15, %c0_16] : memref<1x2xf32, #tpu.memory_space<smem>>
    memref.store %53, %arg3[%c0_15, %c0_16] : memref<1x2xf32, #tpu.memory_space<smem>>
    %c0_17 = arith.constant 0 : index
    %c1 = arith.constant 1 : index
    %55 = memref.load %arg3[%c0_17, %c1] : memref<1x2xf32, #tpu.memory_space<smem>>
    %56 = arith.addf %55, %48 : f32
    %c0_18 = arith.constant 0 : index
    %c1_19 = arith.constant 1 : index
    %57 = memref.load %arg3[%c0_18, %c1_19] : memref<1x2xf32, #tpu.memory_space<smem>>
    memref.store %56, %arg3[%c0_18, %c1_19] : memref<1x2xf32, #tpu.memory_space<smem>>
    return
  }
  func.func @transform_0(%arg0: i32) -> (i32, i32) {
    %c0_i32 = arith.constant 0 : i32
    %c0_i32_0 = arith.constant 0 : i32
    return %arg0, %c0_i32 : i32, i32
  }
  func.func @transform_1(%arg0: i32) -> (i32, i32) {
    %c0_i32 = arith.constant 0 : i32
    %c0_i32_0 = arith.constant 0 : i32
    return %arg0, %c0_i32 : i32, i32
  }
  func.func @transform_2(%arg0: i32) -> (i32, i32) {
    %c0_i32 = arith.constant 0 : i32
    %c0_i32_0 = arith.constant 0 : i32
    %c0_i32_1 = arith.constant 0 : i32
    return %c0_i32, %c0_i32_0 : i32, i32
  }
}

</mosaic_0001>

<llo_original>
// kernel: tpu_custom_call.1
$region0: #{tpu_custom_call.1}
  #allocation0 [shape = 'u32[]', space=smem, size = 0x4, offset = 0x4, fixed_abs, tag = 'smem constant byte address 0x4 - core index']
  #allocation1 [shape = 'u32[144,128]{1,0:T(1,128)}', space=vmem, size = 0x12000, scoped, tag = 'internal scratch']
  %s0 = inlined_call_operand.vmem [shape: f32[8,16], index: 0, kind: input, shape index: {}]
  %s1 = inlined_call_operand.vmem [shape: s32[8,1], index: 1, kind: input, shape index: {}]
  %s2 = inlined_call_operand.hbm [shape: f32[1,2], index: 2, kind: output, shape index: {}]
  %s3 = sld [smem:[#allocation0]]
  $region22: #{tpu_custom_call.1} parent=0
    _
  %s5 = ssub.s32 1, %s3
  %s6 = scalar_select 0, %s5, %s3
  $region1: #{tpu_custom_call.1} parent=0
    #allocation2 [shape = 'u8[512]{0}', space=smem, size = 0x200, scoped, tag = 'output window, operand 0, single buffered']
    #allocation3 [shape = 's32[1]{0}', space=sflag, size = 0x4, scoped, tag = 'scoped memory for tpu_custom_call.1']
    %7 = vsyncpa [#allocation3], 0
    // Predicated region
    $region2: #{tpu_custom_call.1} parent=1 // pred_check
      _
    $region3: #{tpu_custom_call.1} parent=1 // pred_check_branch
      %9 = sbr.rel (0) target = $region5
    $region4: #{tpu_custom_call.1} parent=1 // pred_region
      _
    $region5: #{tpu_custom_call.1} parent=1 // pred_fallthru
      _
    // Predicated region
    $region6: #{tpu_custom_call.1} parent=1 // pred_check
      _
    $region7: #{tpu_custom_call.1} parent=1 // pred_check_branch
      %11 = sbr.rel (0) target = $region9
    $region8: #{tpu_custom_call.1} parent=1 // pred_region
      _
    $region9: #{tpu_custom_call.1} parent=1 // pred_fallthru
      _
    %v12 = vld [vmem:[%s0] sm:$0xff]
    %v13 = vld [vmem:[%s1] sm:$0xff]
    %s14 = smul.u32 0, 8
    %v15 = vlaneseq
    %v16 = vshrl.u32 %v15, 7
    %v17 = vstv %s14
    %v18 = vadd.s32 %v17, %v16
    %vm19 = vcmp.lt.s32.totalorder %v18, 8
    %v20 = vlaneseq
    %v21 = vand.u32 %v20, 127
    %vm22 = vcmask 130048
    %v23 = vsel %vm22, %v12, -inf
    %24 = vmax.xlane.f32.xlu0 %v23
    %v25 = vpop.xlane.xlu0 %24
    %vm26 = vcmp.eq.f32.partialorder %v12, %v25
    %v27 = vsub.f32 %v12, %v25
    %v28 = vmul.f32 %v27, 1.442695
    %v29 = vpow.pop %v28
    %v30 = vsel %vm22, %v29, 0.0
    %31 = vadd.xlane.f32.xlu0 %v30
    %v32 = vpop.xlane.xlu0 %31
    %v33 = vlog2.pop %v32
    %v34 = vmul.f32 %v33, 0.6931472
    %35 = vset.pattern.permute.xlu0 0
    %36 = vperm.xlu0 %35, %v13
    %v37 = vpop.permute.xlu0 %36
    %vm38 = vcmp.eq.s32.totalorder %v21, %v37
    %v39 = vsel %vm38, %v27, 0.0
    %v40 = vsel %vm22, %v39, 0.0
    %41 = vadd.xlane.f32.xlu0 %v40
    %v42 = vpop.xlane.xlu0 %41
    %v43 = vsub.f32 %v34, %v42
    %v44 = vsel %vm26, %v21, 16
    %v45 = vsel %vm22, %v44, 2147483647
    %v46 = vand.u32 %v45, 65535
    %v47 = vshra.s32 %v45, 16
    %v48 = vcvt.s32.f32 %v46
    %v49 = vcvt.s32.f32 %v47
    %50 = vmin.xlane.f32.xlu0 %v49
    %v51 = vpop.xlane.xlu0 %50
    %vm52 = vcmp.eq.f32.partialorder %v49, %v51
    %v53 = vsel %vm52, %v48, inf
    %54 = vmin.xlane.f32.xlu0 %v53
    %v55 = vpop.xlane.xlu0 %54
    %v56 = vcvt.f32.s32 %v55
    %v57 = vcvt.f32.s32 %v51
    %v58 = vshll.u32 %v57, 16
    %v59 = vadd.s32 %v58, %v56
    %v60 = vcvt.s32.f32 %v59
    %v61 = vcvt.s32.f32 %v13
    %v62 = vsub.f32 %v60, %v61
    %v63 = vsel %vm19, %v43, 0.0
    %vm64 = vcmask 7168
    %v65 = vsel %vm64, %v63, 0.0
    %66 = vadd.xlane.f32.xlu0 %v65
    %v67 = vpop.xlane.xlu0 %66
    %v68 = vrot.slane %v67, 4
    %v69 = vadd.f32 %v67, %v68
    %v70 = vrot.slane %v69, 2
    %v71 = vadd.f32 %v69, %v70
    %v72 = vrot.slane %v71, 1
    %v73 = vadd.f32 %v71, %v72
    %s74 = vtos %v73
    %v75 = vmul.f32 %v62, %v62
    %v76 = vsel %vm19, %v75, 0.0
    %v77 = vsel %vm64, %v76, 0.0
    %78 = vadd.xlane.f32.xlu0 %v77
    %v79 = vpop.xlane.xlu0 %78
    %v80 = vrot.slane %v79, 4
    %v81 = vadd.f32 %v79, %v80
    %v82 = vrot.slane %v81, 2
    %v83 = vadd.f32 %v81, %v82
    %v84 = vrot.slane %v83, 1
    %v85 = vadd.f32 %v83, %v84
    %s86 = vtos %v85
    %p87 = scmp.eq.s32.totalorder 0, 0
    // Predicated region
    $region10: #{tpu_custom_call.1} parent=1 // pred_check
      %p88 = pneg %p87
    $region11: #{tpu_custom_call.1} parent=1 // pred_check_branch
      %90 = sbr.rel (%p88) target = $region13
    $region12: #{tpu_custom_call.1} parent=1 // pred_region
      %s91 = scalar_lea.smem [#allocation2], 0
      %92 = sst [smem:[%s91]] 0.0
      %s93 = scalar_lea.smem [#allocation2], 1
      %94 = sst [smem:[%s93]] 0.0
    $region13: #{tpu_custom_call.1} parent=1 // pred_fallthru
      _
    %s95 = sld [smem:[#allocation2]]
    %s96 = sadd.f32 %s95, %s74
    %s97 = scalar_lea.smem [#allocation2], 0
    %98 = sst [smem:[%s97]] %s96
    %s99 = sld [smem:[#allocation2 + $0x1]]
    %s100 = sadd.f32 %s99, %s86
    %s101 = scalar_lea.smem [#allocation2], 1
    %102 = sst [smem:[%s101]] %s100
    // Predicated region
    $region14: #{tpu_custom_call.1} parent=1 // pred_check
      _
    $region15: #{tpu_custom_call.1} parent=1 // pred_check_branch
      %104 = sbr.rel (0) target = $region17
    $region16: #{tpu_custom_call.1} parent=1 // pred_region
      %s106 = ssub.s32 16, 16
      %107 = vsyncadd [#allocation3], %s106
      %110 = dma.smem_to_hbm [#allocation2], 16, %s2, [#allocation3]
    $region17: #{tpu_custom_call.1} parent=1 // pred_fallthru
      _
    // Predicated region
    $region18: #{tpu_custom_call.1} parent=1 // pred_check
      _
    $region19: #{tpu_custom_call.1} parent=1 // pred_check_branch
      %112 = sbr.rel (0) target = $region21
    $region20: #{tpu_custom_call.1} parent=1 // pred_region
      %113 = dma.done [#allocation3], 16
    $region21: #{tpu_custom_call.1} parent=1 // pred_fallthru
      _
    %114 = sfence
    %115 = vsyncpa [#allocation3], 1

</llo_original>
